<compile_context>
chip_gen: v7x
topology: tpu7x:2x2x1
jax: 0.10.0
libtpu: 0.0.40
codegen_flags: <defaults>
</compile_context>

<pallas_src>
import functools

import jax
import jax.numpy as jnp
from jax import lax
from jax.experimental import pallas as pl
from jax.experimental.pallas import tpu as pltpu


def _round_up(v, m):
    return -(-v // m) * m


def _tpu_vmem_capacity_bytes():
    try:
        return int(pltpu.get_tpu_info().vmem_capacity_bytes)
    except Exception:
        return 64 * 1024 * 1024  # conservative (v7x-sized) fallback


# -----------------------------------------------------------------------------
# Per-layer GraphConv kernel (row/K tiled):
#   out[i_tile, :] = act( sum_k  A_eff[i_tile, k_tile] @ (x[k_tile, :] @ W + b) )
# Grid = (Np//tm, Np//tk); k is the reduction axis ("arbitrary"),
# the row axis is "parallel" (sharded across TensorCores on v7x megacore).
# -----------------------------------------------------------------------------
def _graphconv_kernel(a_ref, x_ref, w_ref, b_ref, o_ref, acc_ref, *,
                      apply_leaky, neg_slope, final_normalize):
    k = pl.program_id(1)

    @pl.when(k == 0)
    def _():
        acc_ref[...] = jnp.zeros_like(acc_ref)

    # support block: bf16 x bf16 matmul, f32 accumulate, f32 bias add
    support = jnp.dot(x_ref[...], w_ref[...],
                      preferred_element_type=jnp.float32) + b_ref[...]
    # aggregation: bf16 A_eff x bf16 support, f32 accumulator
    acc_ref[...] += jnp.dot(a_ref[...], support.astype(jnp.bfloat16),
                            preferred_element_type=jnp.float32)

    @pl.when(k == pl.num_programs(1) - 1)
    def _():
        y = acc_ref[...]
        if apply_leaky:
            # LeakyReLU(negative_slope=0.2) on all but the last layer
            y = jnp.where(y >= 0.0, y, neg_slope * y)
        if final_normalize:
            # F.normalize(x): x / max(||x||_2, 1e-12)  (rsqrt -> EUP slot)
            sq = jnp.sum(y * y, axis=-1, keepdims=True)
            y = y * lax.rsqrt(jnp.maximum(sq, 1e-24))
        o_ref[...] = y.astype(o_ref.dtype)


def _graphconv_call(x_p, a_eff_p, w_p, b_p, *, tm, tk, apply_leaky,
                    final_normalize, out_dtype, vmem_limit):
    np_, ci_p = x_p.shape
    co_p = w_p.shape[1]
    grid = (np_ // tm, np_ // tk)

    out_itemsize = jnp.dtype(out_dtype).itemsize
    flops = 2 * grid[0] * np_ * ci_p * co_p + 2 * np_ * np_ * co_p
    bytes_accessed = (np_ * np_ * 2            # A_eff (bf16)
                      + grid[0] * np_ * ci_p * 2  # x re-streamed per row tile
                      + ci_p * co_p * 2        # W
                      + co_p * 4               # b
                      + np_ * co_p * out_itemsize)

    kernel = functools.partial(_graphconv_kernel, apply_leaky=apply_leaky,
                               neg_slope=0.2, final_normalize=final_normalize)

    return pl.pallas_call(
        kernel,
        out_shape=jax.ShapeDtypeStruct((np_, co_p), out_dtype),
        grid_spec=pltpu.PrefetchScalarGridSpec(
            num_scalar_prefetch=0,
            grid=grid,
            in_specs=[
                pl.BlockSpec((tm, tk), lambda i, k: (i, k)),       # A_eff tile
                pl.BlockSpec((tk, ci_p), lambda i, k: (k, 0)),     # x k-tile
                pl.BlockSpec((ci_p, co_p), lambda i, k: (0, 0)),   # W (full)
                pl.BlockSpec((1, co_p), lambda i, k: (0, 0)),      # b (full)
            ],
            out_specs=pl.BlockSpec((tm, co_p), lambda i, k: (i, 0)),
            scratch_shapes=[pltpu.VMEM((tm, co_p), jnp.float32)],
        ),
        compiler_params=pltpu.CompilerParams(
            dimension_semantics=("parallel", "arbitrary"),
            vmem_limit_bytes=int(vmem_limit)),
        cost_estimate=pl.CostEstimate(
            flops=int(flops),
            transcendentals=int(np_ if final_normalize else 0),
            bytes_accessed=int(bytes_accessed)),
    )(a_eff_p, x_p, w_p, b_p)


# -----------------------------------------------------------------------------
# One-time prepare (padding / packing hoisted out of the per-call path)
# -----------------------------------------------------------------------------
def prepare_gcn_dense_att(layer_params, adj_stack, a_att, tile_override=None):
    d, n, _ = adj_stack.shape

    vmem_cap = _tpu_vmem_capacity_bytes()
    vmem_limit = min(100 * 1024 * 1024, (vmem_cap * 3) // 4)
    nominal_tile = tile_override or (256 if vmem_cap <= 64 * 1024 * 1024
                                     else 512)

    if n <= nominal_tile:
        np_ = _round_up(n, 8)
        tm = tk = np_                 # single resident block, grid (1, 1)
    else:
        np_ = _round_up(n, nominal_tile)
        tm = tk = nominal_tile

    # A_eff = sum_i softmax(att)_i * A_i  (exact by linearity); built once per
    # graph so the (d, N, N) stack never enters a kernel.
    att_sm = jax.nn.softmax(a_att.astype(jnp.float32))
    a_eff = jnp.einsum('i,inm->nm', att_sm, adj_stack.astype(jnp.float32))
    a_eff_p = jnp.zeros((np_, np_), jnp.bfloat16).at[:n, :n].set(
        a_eff.astype(jnp.bfloat16))

    # Per-layer channel padding (each ci/co padded independently to 128).
    padded_layers = []
    for (w, b) in layer_params:
        ci, co = w.shape
        ci_p = _round_up(ci, 128)
        co_p = _round_up(co, 128)
        w_p = jnp.zeros((ci_p, co_p), jnp.bfloat16).at[:ci, :co].set(
            w.astype(jnp.bfloat16))
        b_p = jnp.zeros((1, co_p), jnp.float32).at[0, :co].set(
            b.astype(jnp.float32))
        padded_layers.append((w_p, b_p))

    meta = dict(n=n, np_=np_, tm=tm, tk=tk, vmem_limit=vmem_limit,
                c_in=layer_params[0][0].shape[0],
                c_out=layer_params[-1][0].shape[1])
    return a_eff_p, padded_layers, meta


def make_gcn_dense_att_forward(layer_params, adj_stack, a_att,
                               tile_override=None):
    a_eff_p, padded_layers, meta = prepare_gcn_dense_att(
        layer_params, adj_stack, a_att, tile_override=tile_override)
    n, np_ = meta['n'], meta['np_']
    c_in, c_out = meta['c_in'], meta['c_out']
    ci_p0 = padded_layers[0][0].shape[0]
    n_layers = len(padded_layers)

    @jax.jit
    def forward(x):
        x_p = jnp.zeros((np_, ci_p0), jnp.bfloat16).at[:n, :c_in].set(
            x.astype(jnp.bfloat16))
        h = x_p
        for l, (w_p, b_p) in enumerate(padded_layers):
            last = (l == n_layers - 1)
            h = _graphconv_call(
                h, a_eff_p, w_p, b_p, tm=meta['tm'], tk=meta['tk'],
                apply_leaky=not last, final_normalize=last,
                out_dtype=jnp.float32 if last else jnp.bfloat16,
                vmem_limit=meta['vmem_limit'])
        return h[:n, :c_out]

    return forward


# -----------------------------------------------------------------------------
# Pure-JAX reference (mirrors the PyTorch module, eval mode, f32)
# -----------------------------------------------------------------------------
def reference_forward(x, layer_params, adj_stack, a_att):
    att = jax.nn.softmax(a_att)
    n_layers = len(layer_params)
    for i, (w, b) in enumerate(layer_params):
        support = x @ w + b
        out = None
        for j in range(adj_stack.shape[0]):
            y = (adj_stack[j] @ support) * att[j]
            out = y if out is None else out + y
        if i < n_layers - 1:
            out = jnp.where(out >= 0.0, out, 0.2 * out)
        x = out
    norm = jnp.sqrt(jnp.sum(x * x, axis=-1, keepdims=True))
    return x / jnp.maximum(norm, 1e-12)


# -----------------------------------------------------------------------------
# Deterministic parameter / adjacency construction
# -----------------------------------------------------------------------------
def xavier_uniform(key, fan_in, fan_out):
    limit = jnp.sqrt(6.0 / (fan_in + fan_out))
    return jax.random.uniform(key, (fan_in, fan_out), jnp.float32,
                              minval=-limit, maxval=limit)


def make_normalized_adj(key, n):
    # random sparse-ish adjacency with self loops, row-normalized (dense
    # analogue of normt_spm(adj, method='in') on a coo adjacency)
    mask = (jax.random.uniform(key, (n, n)) < 0.15).astype(jnp.float32)
    adj = mask + jnp.eye(n, dtype=jnp.float32)
    row_sum = jnp.sum(adj, axis=1, keepdims=True)
    return adj / jnp.maximum(row_sum, 1.0)


def build_case(key, n, d, in_c, hidden, out_c):
    keys = jax.random.split(key, 8)
    x = jax.random.normal(keys[0], (n, in_c), jnp.float32)
    adj_stack = jnp.stack(
        [make_normalized_adj(keys[1 + i], n) for i in range(d)], axis=0)
    a_att = jnp.ones((d,), jnp.float32)
    layer_params = []
    last_c = in_c
    wkeys = jax.random.split(keys[7], len(hidden) + 1)
    for li, c in enumerate(hidden):
        layer_params.append((xavier_uniform(wkeys[li], last_c, c),
                             jnp.zeros((c,), jnp.float32)))
        last_c = c
    layer_params.append((xavier_uniform(wkeys[-1], last_c, out_c),
                         jnp.zeros((out_c,), jnp.float32)))
    return x, adj_stack, a_att, layer_params


if __name__ == "__main__":
    key = jax.random.PRNGKey(0)
    k1, k2 = jax.random.split(key)

    # --- Case 1: small config (single resident block, grid (1,1)) ------------
    N, D, IN_C, HIDDEN, OUT_C = 32, 3, 16, [32], 16
    x, adj_stack, a_att, layer_params = build_case(k1, N, D, IN_C, HIDDEN, OUT_C)

    fwd = make_gcn_dense_att_forward(layer_params, adj_stack, a_att)
    out = jax.block_until_ready(fwd(x))
    assert out.shape == (N, OUT_C)
    assert bool(jnp.all(jnp.isfinite(out)))
    ref = reference_forward(x, layer_params, adj_stack, a_att)
    assert bool(jnp.allclose(out, ref, rtol=5e-2, atol=3e-2)), \
        "kernel output mismatch vs pure-JAX reference (case 1)"

    # --- Case 2: exercise the row/K-tiled accumulator path (grid (2,2)) ------
    N2 = 160
    x2, adj2, att2, params2 = build_case(k2, N2, D, IN_C, HIDDEN, OUT_C)
    fwd2 = make_gcn_dense_att_forward(params2, adj2, att2, tile_override=128)
    out2 = jax.block_until_ready(fwd2(x2))
    assert out2.shape == (N2, OUT_C)
    assert bool(jnp.all(jnp.isfinite(out2)))
    ref2 = reference_forward(x2, params2, adj2, att2)
    assert bool(jnp.allclose(out2, ref2, rtol=5e-2, atol=3e-2)), \
        "kernel output mismatch vs pure-JAX reference (case 2, tiled)"

    print("KERNEL_OK")
</pallas_src>

<mosaic_0001>
module attributes {stable_mosaic.version = 11 : i64} {
  func.func @_graphconv_kernel(%arg0: i32, %arg1: i32, %arg2: memref<32x32xbf16, #tpu.memory_space<vmem>>, %arg3: memref<32x128xbf16, #tpu.memory_space<vmem>>, %arg4: memref<128x128xbf16, #tpu.memory_space<vmem>>, %arg5: memref<1x128xf32, #tpu.memory_space<vmem>>, %arg6: memref<32x128xbf16, #tpu.memory_space<vmem>>, %arg7: memref<32x128xf32, #tpu.memory_space<vmem>>) attributes {dimension_semantics = [#tpu.dimension_semantics<parallel>, #tpu.dimension_semantics<arbitrary>], iteration_bounds = array<i64: 1, 1>, scalar_prefetch = 0 : i64, scratch_operands = 1 : i64, tpu.core_type = #tpu.core_type<tc>, window_params = [{transform_indices = @transform_0, window_bounds = array<i64: 32, 32>}, {transform_indices = @transform_1, window_bounds = array<i64: 32, 128>}, {pipeline_mode = #tpu.pipeline_mode<synchronous>, transform_indices = @transform_2, window_bounds = array<i64: 128, 128>}, {pipeline_mode = #tpu.pipeline_mode<synchronous>, transform_indices = @transform_3, window_bounds = array<i64: 1, 128>}, {transform_indices = @transform_4, window_bounds = array<i64: 32, 128>}]} {
    %c0_i32 = arith.constant 0 : i32
    %0 = arith.cmpi eq, %arg1, %c0_i32 : i32
    %1 = arith.extui %0 : i1 to i32
    %c0_i32_0 = arith.constant 0 : i32
    %2 = arith.cmpi ne, %1, %c0_i32_0 : i32
    scf.if %2 {
      %cst_15 = arith.constant 0.000000e+00 : f32
      %18 = vector.broadcast %cst_15 : f32 to vector<32x128xf32>
      %c0_16 = arith.constant 0 : index
      %c0_17 = arith.constant 0 : index
      %19 = vector.load %arg7[%c0_16, %c0_17] : memref<32x128xf32, #tpu.memory_space<vmem>>, vector<32x128xf32>
      tpu.vector_store %arg7[%c0_16, %c0_17], %18 {strides = array<i32>} : memref<32x128xf32, #tpu.memory_space<vmem>>, vector<32x128xf32>,
    } else {
    }
    %c0 = arith.constant 0 : index
    %c0_1 = arith.constant 0 : index
    %3 = vector.load %arg3[%c0, %c0_1] : memref<32x128xbf16, #tpu.memory_space<vmem>>, vector<32x128xbf16>
    %c0_2 = arith.constant 0 : index
    %c0_3 = arith.constant 0 : index
    %4 = vector.load %arg4[%c0_2, %c0_3] : memref<128x128xbf16, #tpu.memory_space<vmem>>, vector<128x128xbf16>
    %cst = arith.constant dense<0.000000e+00> : vector<32x128xf32>
    %5 = tpu.matmul %3, %4, %cst {dimension_numbers = #tpu.dot_dimension_numbers<[1], [0], [0], [1], [0, 0, 1, 1], [], []>} : vector<32x128xbf16>, vector<128x128xbf16>, vector<32x128xf32> -> vector<32x128xf32>
    %c0_4 = arith.constant 0 : index
    %c0_5 = arith.constant 0 : index
    %6 = vector.load %arg5[%c0_4, %c0_5] : memref<1x128xf32, #tpu.memory_space<vmem>>, vector<1x128xf32>
    %7 = vector.broadcast %6 : vector<1x128xf32> to vector<32x128xf32>
    %8 = arith.addf %5, %7 : vector<32x128xf32>
    %c0_6 = arith.constant 0 : index
    %c0_7 = arith.constant 0 : index
    %9 = vector.load %arg7[%c0_6, %c0_7] : memref<32x128xf32, #tpu.memory_space<vmem>>, vector<32x128xf32>
    %c0_8 = arith.constant 0 : index
    %c0_9 = arith.constant 0 : index
    %10 = vector.load %arg2[%c0_8, %c0_9] : memref<32x32xbf16, #tpu.memory_space<vmem>>, vector<32x32xbf16>
    %11 = arith.truncf %8 : vector<32x128xf32> to vector<32x128xbf16>
    %cst_10 = arith.constant dense<0.000000e+00> : vector<32x128xf32>
    %12 = tpu.matmul %10, %11, %cst_10 {dimension_numbers = #tpu.dot_dimension_numbers<[1], [0], [0], [1], [0, 0, 1, 1], [], []>} : vector<32x32xbf16>, vector<32x128xbf16>, vector<32x128xf32> -> vector<32x128xf32>
    %13 = arith.addf %9, %12 : vector<32x128xf32>
    %c0_11 = arith.constant 0 : index
    %c0_12 = arith.constant 0 : index
    %14 = vector.load %arg7[%c0_11, %c0_12] : memref<32x128xf32, #tpu.memory_space<vmem>>, vector<32x128xf32>
    tpu.vector_store %arg7[%c0_11, %c0_12], %13 {strides = array<i32>} : memref<32x128xf32, #tpu.memory_space<vmem>>, vector<32x128xf32>,
    %c0_i32_13 = arith.constant 0 : i32
    %15 = arith.cmpi eq, %arg1, %c0_i32_13 : i32
    %16 = arith.extui %15 : i1 to i32
    %c0_i32_14 = arith.constant 0 : i32
    %17 = arith.cmpi ne, %16, %c0_i32_14 : i32
    scf.if %17 {
      %c0_15 = arith.constant 0 : index
      %c0_16 = arith.constant 0 : index
      %18 = vector.load %arg7[%c0_15, %c0_16] : memref<32x128xf32, #tpu.memory_space<vmem>>, vector<32x128xf32>
      %cst_17 = arith.constant 0.000000e+00 : f32
      %19 = vector.broadcast %cst_17 : f32 to vector<32x128xf32>
      %20 = arith.cmpf oge, %18, %19 : vector<32x128xf32>
      %cst_18 = arith.constant 2.000000e-01 : f32
      %21 = vector.broadcast %cst_18 : f32 to vector<32x128xf32>
      %22 = arith.mulf %21, %18 : vector<32x128xf32>
      %23 = arith.select %20, %18, %22 : vector<32x128xi1>, vector<32x128xf32>
      %24 = arith.truncf %23 : vector<32x128xf32> to vector<32x128xbf16>
      %c0_19 = arith.constant 0 : index
      %c0_20 = arith.constant 0 : index
      %25 = vector.load %arg6[%c0_19, %c0_20] : memref<32x128xbf16, #tpu.memory_space<vmem>>, vector<32x128xbf16>
      tpu.vector_store %arg6[%c0_19, %c0_20], %24 {strides = array<i32>} : memref<32x128xbf16, #tpu.memory_space<vmem>>, vector<32x128xbf16>,
    } else {
    }
    return
  }
  func.func @transform_0(%arg0: i32, %arg1: i32) -> (i32, i32) {
    %c0_i32 = arith.constant 0 : i32
    return %arg0, %arg1 : i32, i32
  }
  func.func @transform_1(%arg0: i32, %arg1: i32) -> (i32, i32) {
    %c0_i32 = arith.constant 0 : i32
    %c0_i32_0 = arith.constant 0 : i32
    return %arg1, %c0_i32 : i32, i32
  }
  func.func @transform_2(%arg0: i32, %arg1: i32) -> (i32, i32) {
    %c0_i32 = arith.constant 0 : i32
    %c0_i32_0 = arith.constant 0 : i32
    %c0_i32_1 = arith.constant 0 : i32
    return %c0_i32, %c0_i32_0 : i32, i32
  }
  func.func @transform_3(%arg0: i32, %arg1: i32) -> (i32, i32) {
    %c0_i32 = arith.constant 0 : i32
    %c0_i32_0 = arith.constant 0 : i32
    %c0_i32_1 = arith.constant 0 : i32
    return %c0_i32, %c0_i32_0 : i32, i32
  }
  func.func @transform_4(%arg0: i32, %arg1: i32) -> (i32, i32) {
    %c0_i32 = arith.constant 0 : i32
    %c0_i32_0 = arith.constant 0 : i32
    return %arg0, %c0_i32 : i32, i32
  }
}

module attributes {stable_mosaic.version = 11 : i64} {
  func.func @_graphconv_kernel(%arg0: i32, %arg1: i32, %arg2: memref<32x32xbf16, #tpu.memory_space<vmem>>, %arg3: memref<32x128xbf16, #tpu.memory_space<vmem>>, %arg4: memref<128x128xbf16, #tpu.memory_space<vmem>>, %arg5: memref<1x128xf32, #tpu.memory_space<vmem>>, %arg6: memref<32x128xf32, #tpu.memory_space<vmem>>, %arg7: memref<32x128xf32, #tpu.memory_space<vmem>>) attributes {dimension_semantics = [#tpu.dimension_semantics<parallel>, #tpu.dimension_semantics<arbitrary>], iteration_bounds = array<i64: 1, 1>, scalar_prefetch = 0 : i64, scratch_operands = 1 : i64, tpu.core_type = #tpu.core_type<tc>, window_params = [{transform_indices = @transform_0, window_bounds = array<i64: 32, 32>}, {transform_indices = @transform_1, window_bounds = array<i64: 32, 128>}, {pipeline_mode = #tpu.pipeline_mode<synchronous>, transform_indices = @transform_2, window_bounds = array<i64: 128, 128>}, {pipeline_mode = #tpu.pipeline_mode<synchronous>, transform_indices = @transform_3, window_bounds = array<i64: 1, 128>}, {transform_indices = @transform_4, window_bounds = array<i64: 32, 128>}]} {
    %c0_i32 = arith.constant 0 : i32
    %0 = arith.cmpi eq, %arg1, %c0_i32 : i32
    %1 = arith.extui %0 : i1 to i32
    %c0_i32_0 = arith.constant 0 : i32
    %2 = arith.cmpi ne, %1, %c0_i32_0 : i32
    scf.if %2 {
      %cst_15 = arith.constant 0.000000e+00 : f32
      %18 = vector.broadcast %cst_15 : f32 to vector<32x128xf32>
      %c0_16 = arith.constant 0 : index
      %c0_17 = arith.constant 0 : index
      %19 = vector.load %arg7[%c0_16, %c0_17] : memref<32x128xf32, #tpu.memory_space<vmem>>, vector<32x128xf32>
      tpu.vector_store %arg7[%c0_16, %c0_17], %18 {strides = array<i32>} : memref<32x128xf32, #tpu.memory_space<vmem>>, vector<32x128xf32>,
    } else {
    }
    %c0 = arith.constant 0 : index
    %c0_1 = arith.constant 0 : index
    %3 = vector.load %arg3[%c0, %c0_1] : memref<32x128xbf16, #tpu.memory_space<vmem>>, vector<32x128xbf16>
    %c0_2 = arith.constant 0 : index
    %c0_3 = arith.constant 0 : index
    %4 = vector.load %arg4[%c0_2, %c0_3] : memref<128x128xbf16, #tpu.memory_space<vmem>>, vector<128x128xbf16>
    %cst = arith.constant dense<0.000000e+00> : vector<32x128xf32>
    %5 = tpu.matmul %3, %4, %cst {dimension_numbers = #tpu.dot_dimension_numbers<[1], [0], [0], [1], [0, 0, 1, 1], [], []>} : vector<32x128xbf16>, vector<128x128xbf16>, vector<32x128xf32> -> vector<32x128xf32>
    %c0_4 = arith.constant 0 : index
    %c0_5 = arith.constant 0 : index
    %6 = vector.load %arg5[%c0_4, %c0_5] : memref<1x128xf32, #tpu.memory_space<vmem>>, vector<1x128xf32>
    %7 = vector.broadcast %6 : vector<1x128xf32> to vector<32x128xf32>
    %8 = arith.addf %5, %7 : vector<32x128xf32>
    %c0_6 = arith.constant 0 : index
    %c0_7 = arith.constant 0 : index
    %9 = vector.load %arg7[%c0_6, %c0_7] : memref<32x128xf32, #tpu.memory_space<vmem>>, vector<32x128xf32>
    %c0_8 = arith.constant 0 : index
    %c0_9 = arith.constant 0 : index
    %10 = vector.load %arg2[%c0_8, %c0_9] : memref<32x32xbf16, #tpu.memory_space<vmem>>, vector<32x32xbf16>
    %11 = arith.truncf %8 : vector<32x128xf32> to vector<32x128xbf16>
    %cst_10 = arith.constant dense<0.000000e+00> : vector<32x128xf32>
    %12 = tpu.matmul %10, %11, %cst_10 {dimension_numbers = #tpu.dot_dimension_numbers<[1], [0], [0], [1], [0, 0, 1, 1], [], []>} : vector<32x32xbf16>, vector<32x128xbf16>, vector<32x128xf32> -> vector<32x128xf32>
    %13 = arith.addf %9, %12 : vector<32x128xf32>
    %c0_11 = arith.constant 0 : index
    %c0_12 = arith.constant 0 : index
    %14 = vector.load %arg7[%c0_11, %c0_12] : memref<32x128xf32, #tpu.memory_space<vmem>>, vector<32x128xf32>
    tpu.vector_store %arg7[%c0_11, %c0_12], %13 {strides = array<i32>} : memref<32x128xf32, #tpu.memory_space<vmem>>, vector<32x128xf32>,
    %c0_i32_13 = arith.constant 0 : i32
    %15 = arith.cmpi eq, %arg1, %c0_i32_13 : i32
    %16 = arith.extui %15 : i1 to i32
    %c0_i32_14 = arith.constant 0 : i32
    %17 = arith.cmpi ne, %16, %c0_i32_14 : i32
    scf.if %17 {
      %c0_15 = arith.constant 0 : index
      %c0_16 = arith.constant 0 : index
      %18 = vector.load %arg7[%c0_15, %c0_16] : memref<32x128xf32, #tpu.memory_space<vmem>>, vector<32x128xf32>
      %19 = arith.mulf %18, %18 : vector<32x128xf32>
      %cst_17 = arith.constant dense<0.000000e+00> : vector<32xf32>
      %20 = vector.multi_reduction <add>, %19, %cst_17 [1] : vector<32x128xf32> to vector<32xf32>
      %21 = vector.shape_cast %20 : vector<32xf32> to vector<32x1xf32>
      %cst_18 = arith.constant 1.000000e-24 : f32
      %22 = vector.broadcast %cst_18 : f32 to vector<32x1xf32>
      %23 = arith.maximumf %21, %22 : vector<32x1xf32>
      %24 = math.rsqrt %23 : vector<32x1xf32>
      %25 = vector.broadcast %24 : vector<32x1xf32> to vector<32x128xf32>
      %26 = arith.mulf %18, %25 : vector<32x128xf32>
      %c0_19 = arith.constant 0 : index
      %c0_20 = arith.constant 0 : index
      %27 = vector.load %arg6[%c0_19, %c0_20] : memref<32x128xf32, #tpu.memory_space<vmem>>, vector<32x128xf32>
      tpu.vector_store %arg6[%c0_19, %c0_20], %26 {strides = array<i32>} : memref<32x128xf32, #tpu.memory_space<vmem>>, vector<32x128xf32>,
    } else {
    }
    return
  }
  func.func @transform_0(%arg0: i32, %arg1: i32) -> (i32, i32) {
    %c0_i32 = arith.constant 0 : i32
    return %arg0, %arg1 : i32, i32
  }
  func.func @transform_1(%arg0: i32, %arg1: i32) -> (i32, i32) {
    %c0_i32 = arith.constant 0 : i32
    %c0_i32_0 = arith.constant 0 : i32
    return %arg1, %c0_i32 : i32, i32
  }
  func.func @transform_2(%arg0: i32, %arg1: i32) -> (i32, i32) {
    %c0_i32 = arith.constant 0 : i32
    %c0_i32_0 = arith.constant 0 : i32
    %c0_i32_1 = arith.constant 0 : i32
    return %c0_i32, %c0_i32_0 : i32, i32
  }
  func.func @transform_3(%arg0: i32, %arg1: i32) -> (i32, i32) {
    %c0_i32 = arith.constant 0 : i32
    %c0_i32_0 = arith.constant 0 : i32
    %c0_i32_1 = arith.constant 0 : i32
    return %c0_i32, %c0_i32_0 : i32, i32
  }
  func.func @transform_4(%arg0: i32, %arg1: i32) -> (i32, i32) {
    %c0_i32 = arith.constant 0 : i32
    %c0_i32_0 = arith.constant 0 : i32
    return %arg0, %c0_i32 : i32, i32
  }
}

</mosaic_0001>

<llo_original>
// kernel: forward.3
$region0: #{forward.3}
  #allocation0 [shape = 'u32[]', space=smem, size = 0x4, offset = 0x4, fixed_abs, tag = 'smem constant byte address 0x4 - core index']
  #allocation1 [shape = 'u32[144,128]{1,0:T(1,128)}', space=vmem, size = 0x12000, scoped, tag = 'internal scratch']
  #allocation2 [shape = 'f32[32,128]{1,0:T(8,128)}', space=vmem, size = 0x4000, scoped, tag = 'scratch operand']
  %s0 = inlined_call_operand.vmem [shape: bf16[32,32], index: 0, kind: input, shape index: {}]
  %s1 = inlined_call_operand.vmem [shape: bf16[32,128], index: 1, kind: input, shape index: {}]
  %s2 = inlined_call_operand.vmem [shape: bf16[128,128], index: 2, kind: input, shape index: {}]
  %s3 = inlined_call_operand.vmem [shape: f32[1,128], index: 3, kind: input, shape index: {}]
  %s4 = inlined_call_operand.vmem [shape: f32[32,128], index: 4, kind: output, shape index: {}]
  %s5 = sld [smem:[#allocation0]]
  $region34: #{forward.3} parent=0
    _
  %s7 = ssub.s32 1, %s5
  %s8 = scalar_select 0, %s7, %s5
  // Predicated region
  $region2: #{forward.3} parent=0 // pred_check
    _
  $region3: #{forward.3} parent=0 // pred_check_branch
    %10 = sbr.rel (0) target = $region5
  $region4: #{forward.3} parent=0 // pred_region
    _
  $region5: #{forward.3} parent=0 // pred_fallthru
    _
  // Predicated region
  $region6: #{forward.3} parent=0 // pred_check
    _
  $region7: #{forward.3} parent=0 // pred_check_branch
    %12 = sbr.rel (0) target = $region9
  $region8: #{forward.3} parent=0 // pred_region
    _
  $region9: #{forward.3} parent=0 // pred_fallthru
    _
  // Predicated region
  $region10: #{forward.3} parent=0 // pred_check
    _
  $region11: #{forward.3} parent=0 // pred_check_branch
    %14 = sbr.rel (0) target = $region13
  $region12: #{forward.3} parent=0 // pred_region
    _
  $region13: #{forward.3} parent=0 // pred_fallthru
    _
  // Predicated region
  $region14: #{forward.3} parent=0 // pred_check
    _
  $region15: #{forward.3} parent=0 // pred_check_branch
    %16 = sbr.rel (0) target = $region17
  $region16: #{forward.3} parent=0 // pred_region
    _
  $region17: #{forward.3} parent=0 // pred_fallthru
    _
  %p18 = scmp.eq.s32.totalorder 0, 0
  // Predicated region
  $region18: #{forward.3} parent=0 // pred_check
    %p19 = pneg %p18
  $region19: #{forward.3} parent=0 // pred_check_branch
    %21 = sbr.rel (%p19) target = $region21
  $region20: #{forward.3} parent=0 // pred_region
    %22 = vst [vmem:[#allocation2] sm:$0xff] 0.0
    %23 = vst [vmem:[#allocation2 + $0x8] sm:$0xff] 0.0
    %24 = vst [vmem:[#allocation2 + $0x10] sm:$0xff] 0.0
    %25 = vst [vmem:[#allocation2 + $0x18] sm:$0xff] 0.0
  $region21: #{forward.3} parent=0 // pred_fallthru
    _
  %v26 = vld [vmem:[%s1] sm:$0xf]
  %v27 = vld [vmem:[%s1 + $0x4] sm:$0xf]
  %v28 = vld [vmem:[%s1 + $0x8] sm:$0xf]
  %v29 = vld [vmem:[%s1 + $0xc] sm:$0xf]
  %v30 = vld [vmem:[%s2] sm:$0xf]
  %v31 = vld [vmem:[%s2 + $0x4] sm:$0xf]
  %v32 = vld [vmem:[%s2 + $0x8] sm:$0xf]
  %v33 = vld [vmem:[%s2 + $0xc] sm:$0xf]
  %v34 = vld [vmem:[%s2 + $0x10] sm:$0xf]
  %v35 = vld [vmem:[%s2 + $0x14] sm:$0xf]
  %v36 = vld [vmem:[%s2 + $0x18] sm:$0xf]
  %v37 = vld [vmem:[%s2 + $0x1c] sm:$0xf]
  %v38 = vld [vmem:[%s2 + $0x20] sm:$0xf]
  %v39 = vld [vmem:[%s2 + $0x24] sm:$0xf]
  %v40 = vld [vmem:[%s2 + $0x28] sm:$0xf]
  %v41 = vld [vmem:[%s2 + $0x2c] sm:$0xf]
  %v42 = vld [vmem:[%s2 + $0x30] sm:$0xf]
  %v43 = vld [vmem:[%s2 + $0x34] sm:$0xf]
  %v44 = vld [vmem:[%s2 + $0x38] sm:$0xf]
  %v45 = vld [vmem:[%s2 + $0x3c] sm:$0xf]
  %v46 = vld [vmem:[%s3] sm:$0x1]
  %v48 = vlaneseq
  %v49 = vshrl.u32 %v48, 7
  %v50 = vsub.s32 0, %v49
  %v51 = vrot.slane %v46, %v50
  %v57 = vunpack.c.l.b16 %v26
  %v58 = vunpack.c.l.b16 %v27
  %v59 = vunpack.c.l.b16 %v28
  %v60 = vunpack.c.l.b16 %v29
  %v61 = vpack.c.b16 %v58, %v57
  %v62 = vpack.c.b16 %v60, %v59
  %v81 = vunpack.c.l.b16 %v30
  %v82 = vunpack.c.l.b16 %v31
  %v83 = vunpack.c.l.b16 %v32
  %v84 = vunpack.c.l.b16 %v33
  %v85 = vunpack.c.l.b16 %v34
  %v86 = vunpack.c.l.b16 %v35
  %v87 = vunpack.c.l.b16 %v36
  %v88 = vunpack.c.l.b16 %v37
  %v89 = vunpack.c.l.b16 %v38
  %v90 = vunpack.c.l.b16 %v39
  %v91 = vunpack.c.l.b16 %v40
  %v92 = vunpack.c.l.b16 %v41
  %v93 = vunpack.c.l.b16 %v42
  %v94 = vunpack.c.l.b16 %v43
  %v95 = vunpack.c.l.b16 %v44
  %v96 = vunpack.c.l.b16 %v45
  %v97 = vpack.c.b16 %v82, %v81
  %v98 = vpack.c.b16 %v84, %v83
  %v99 = vpack.c.b16 %v86, %v85
  %v100 = vpack.c.b16 %v88, %v87
  %v101 = vpack.c.b16 %v90, %v89
  %v102 = vpack.c.b16 %v92, %v91
  %v103 = vpack.c.b16 %v94, %v93
  %v104 = vpack.c.b16 %v96, %v95
  %113 = vmatprep.subr.bf16.mxu0 0
  %114 = vmatpush1.bf16.msra.mxu0 %v97
  %115 = vmatprep.subr.bf16.mxu0 0
  %116 = vmatpush1.bf16.msra.mxu0 %v98
  %117 = vmatprep.subr.bf16.mxu0 0
  %118 = vmatpush1.bf16.msra.mxu0 %v99
  %119 = vmatprep.subr.bf16.mxu0 0
  %120 = vmatpush1.bf16.msra.mxu0 %v100
  %121 = vmatprep.subr.bf16.mxu0 0
  %122 = vmatpush1.bf16.msra.mxu0 %v101
  %123 = vmatprep.subr.bf16.mxu0 0
  %124 = vmatpush1.bf16.msra.mxu0 %v102
  %125 = vmatprep.subr.bf16.mxu0 0
  %126 = vmatpush1.bf16.msra.mxu0 %v103
  %127 = vmatprep.subr.bf16.mxu0 0
  %128 = vmatpush1.bf16.msra.mxu0 %v104
  %129 = vmatprep.subr.bf16.mxu0 0
  %130 = vmatpush1.bf16.msra.mxu0 0
  %131 = vmatprep.subr.bf16.mxu0 0
  %132 = vmatpush1.bf16.msra.mxu0 0
  %133 = vmatprep.subr.bf16.mxu0 0
  %134 = vmatpush1.bf16.msra.mxu0 0
  %135 = vmatprep.subr.bf16.mxu0 0
  %136 = vmatpush1.bf16.msra.mxu0 0
  %137 = vmatprep.subr.bf16.mxu0 0
  %138 = vmatpush1.bf16.msra.mxu0 0
  %139 = vmatprep.subr.bf16.mxu0 0
  %140 = vmatpush1.bf16.msra.mxu0 0
  %141 = vmatprep.subr.bf16.mxu0 0
  %142 = vmatpush1.bf16.msra.mxu0 0
  %143 = vmatprep.subr.bf16.mxu0 0
  %144 = vmatpush1.bf16.msra.mxu0 0
  %145 = vmatprep.mubr.bf16.mxu0 0
  %146 = vmatmul.mubr.bf16.gmra.mrb[0].mxu0 %v61
  %v147 = vpop.f32.mrb[0].mxu0
  %v148 = vadd.f32 %v51, %v147
  %v149 = vpop.f32.mrb[0].mxu0
  %v150 = vpop.f32.mrb[0].mxu0
  %v151 = vadd.f32 %v51, %v150
  %v152 = vpop.f32.mrb[0].mxu0
  %153 = vmatprep.mubr.bf16.mxu0 0
  %154 = vmatmul.mubr.bf16.gmra.mrb[0].mxu0 %v62
  %v155 = vpop.f32.mrb[0].mxu0
  %v156 = vadd.f32 %v51, %v155
  %v157 = vpop.f32.mrb[0].mxu0
  %v158 = vpop.f32.mrb[0].mxu0
  %v159 = vadd.f32 %v51, %v158
  %v160 = vpop.f32.mrb[0].mxu0
  %161 = vdwg.mxu0
  %v162 = vld [vmem:[#allocation2] sm:$0xff]
  %v163 = vld [vmem:[#allocation2 + $0x8] sm:$0xff]
  %v164 = vld [vmem:[#allocation2 + $0x10] sm:$0xff]
  %v165 = vld [vmem:[#allocation2 + $0x18] sm:$0xff]
  %v166 = vld [vmem:[%s0] sm:$0xf]
  %v167 = vld [vmem:[%s0 + $0x4] sm:$0xf]
  %v168 = vld [vmem:[%s0 + $0x8] sm:$0xf]
  %v169 = vld [vmem:[%s0 + $0xc] sm:$0xf]
  %v170 = vpack.c.bf16 %v151, %v148
  %v171 = vpack.c.bf16 %v159, %v156
  %v176 = vunpack.c.l.b16 %v166
  %v177 = vunpack.c.l.b16 %v167
  %v178 = vunpack.c.l.b16 %v168
  %v179 = vunpack.c.l.b16 %v169
  %v180 = vpack.c.b16 %v177, %v176
  %v181 = vpack.c.b16 %v179, %v178
  %vm182 = vcmask 261120
  %v184 = vsel %vm182, %v180, 0
  %v187 = vsel %vm182, %v181, 0
  %189 = vmatprep.subr.bf16.mxu0 0
  %190 = vmatpush1.bf16.msra.mxu0 %v170
  %191 = vmatprep.subr.bf16.mxu0 0
  %192 = vmatpush1.bf16.msra.mxu0 %v171
  %193 = vmatprep.subr.bf16.mxu0 0
  %194 = vmatpush1.bf16.msra.mxu0 0
  %195 = vmatprep.subr.bf16.mxu0 0
  %196 = vmatpush1.bf16.msra.mxu0 0
  %197 = vmatprep.subr.bf16.mxu0 0
  %198 = vmatpush1.bf16.msra.mxu0 0
  %199 = vmatprep.subr.bf16.mxu0 0
  %200 = vmatpush1.bf16.msra.mxu0 0
  %201 = vmatprep.subr.bf16.mxu0 0
  %202 = vmatpush1.bf16.msra.mxu0 0
  %203 = vmatprep.subr.bf16.mxu0 0
  %204 = vmatpush1.bf16.msra.mxu0 0
  %205 = vmatprep.subr.bf16.mxu0 0
  %206 = vmatpush1.bf16.msra.mxu0 0
  %207 = vmatprep.subr.bf16.mxu0 0
  %208 = vmatpush1.bf16.msra.mxu0 0
  %209 = vmatprep.subr.bf16.mxu0 0
  %210 = vmatpush1.bf16.msra.mxu0 0
  %211 = vmatprep.subr.bf16.mxu0 0
  %212 = vmatpush1.bf16.msra.mxu0 0
  %213 = vmatprep.subr.bf16.mxu0 0
  %214 = vmatpush1.bf16.msra.mxu0 0
  %215 = vmatprep.subr.bf16.mxu0 0
  %216 = vmatpush1.bf16.msra.mxu0 0
  %217 = vmatprep.subr.bf16.mxu0 0
  %218 = vmatpush1.bf16.msra.mxu0 0
  %219 = vmatprep.subr.bf16.mxu0 0
  %220 = vmatpush1.bf16.msra.mxu0 0
  %221 = vmatprep.mubr.bf16.mxu0 0
  %222 = vmatmul.mubr.bf16.gmra.mrb[0].mxu0 %v184
  %v223 = vpop.f32.mrb[0].mxu0
  %v224 = vadd.f32 0.0, %v223
  %v225 = vpop.f32.mrb[0].mxu0
  %v226 = vpop.f32.mrb[0].mxu0
  %v227 = vadd.f32 0.0, %v226
  %v228 = vpop.f32.mrb[0].mxu0
  %229 = vmatprep.mubr.bf16.mxu0 0
  %230 = vmatmul.mubr.bf16.gmra.mrb[0].mxu0 %v187
  %v231 = vpop.f32.mrb[0].mxu0
  %v232 = vadd.f32 0.0, %v231
  %v233 = vpop.f32.mrb[0].mxu0
  %v234 = vpop.f32.mrb[0].mxu0
  %v235 = vadd.f32 0.0, %v234
  %v236 = vpop.f32.mrb[0].mxu0
  %237 = vdwg.mxu0
  %v238 = vadd.f32 %v162, %v224
  %v239 = vadd.f32 %v163, %v227
  %v240 = vadd.f32 %v164, %v232
  %v241 = vadd.f32 %v165, %v235
  %242 = vst [vmem:[#allocation2] sm:$0xff] %v238
  %243 = vst [vmem:[#allocation2 + $0x8] sm:$0xff] %v239
  %244 = vst [vmem:[#allocation2 + $0x10] sm:$0xff] %v240
  %245 = vst [vmem:[#allocation2 + $0x18] sm:$0xff] %v241
  // Predicated region
  $region22: #{forward.3} parent=0 // pred_check
    %p246 = pneg %p18
  $region23: #{forward.3} parent=0 // pred_check_branch
    %248 = sbr.rel (%p246) target = $region25
  $region24: #{forward.3} parent=0 // pred_region
    %v249 = vld [vmem:[#allocation2] sm:$0xff]
    %v250 = vld [vmem:[#allocation2 + $0x8] sm:$0xff]
    %v251 = vld [vmem:[#allocation2 + $0x10] sm:$0xff]
    %v252 = vld [vmem:[#allocation2 + $0x18] sm:$0xff]
    %v253 = vmul.f32 %v249, %v249
    %v254 = vmul.f32 %v250, %v250
    %v255 = vmul.f32 %v251, %v251
    %v256 = vmul.f32 %v252, %v252
    %257 = vadd.xlane.f32.xlu0 %v253
    %v258 = vpop.xlane.xlu0 %257
    %259 = vadd.xlane.f32.xlu0 %v254
    %v260 = vpop.xlane.xlu0 %259
    %261 = vadd.xlane.f32.xlu0 %v255
    %v262 = vpop.xlane.xlu0 %261
    %263 = vadd.xlane.f32.xlu0 %v256
    %v264 = vpop.xlane.xlu0 %263
    %v265 = vmax.f32 %v258, 1e-24
    %v266 = vmax.f32 %v260, 1e-24
    %v267 = vmax.f32 %v262, 1e-24
    %v268 = vmax.f32 %v264, 1e-24
    %v269 = vrsqrt.pop %v265
    %v270 = vrsqrt.pop %v266
    %v271 = vrsqrt.pop %v267
    %v272 = vrsqrt.pop %v268
    %v273 = vmul.f32 %v249, %v269
    %v274 = vmul.f32 %v250, %v270
    %v275 = vmul.f32 %v251, %v271
    %v276 = vmul.f32 %v252, %v272
    %277 = vst [vmem:[%s4] sm:$0xff] %v273
    %278 = vst [vmem:[%s4 + $0x8] sm:$0xff] %v274
    %279 = vst [vmem:[%s4 + $0x10] sm:$0xff] %v275
    %280 = vst [vmem:[%s4 + $0x18] sm:$0xff] %v276
  $region25: #{forward.3} parent=0 // pred_fallthru
    _
  // Predicated region
  $region26: #{forward.3} parent=0 // pred_check
    _
  $region27: #{forward.3} parent=0 // pred_check_branch
    %282 = sbr.rel (0) target = $region29
  $region28: #{forward.3} parent=0 // pred_region
    _
  $region29: #{forward.3} parent=0 // pred_fallthru
    _
  // Predicated region
  $region30: #{forward.3} parent=0 // pred_check
    _
  $region31: #{forward.3} parent=0 // pred_check_branch
    %284 = sbr.rel (0) target = $region33
  $region32: #{forward.3} parent=0 // pred_region
    _
  $region33: #{forward.3} parent=0 // pred_fallthru
    _

// kernel: forward.2
$region0: #{forward.2}
  #allocation0 [shape = 'u32[]', space=smem, size = 0x4, offset = 0x4, fixed_abs, tag = 'smem constant byte address 0x4 - core index']
  #allocation1 [shape = 'u32[144,128]{1,0:T(1,128)}', space=vmem, size = 0x12000, scoped, tag = 'internal scratch']
  #allocation2 [shape = 'f32[32,128]{1,0:T(8,128)}', space=vmem, size = 0x4000, scoped, tag = 'scratch operand']
  %s0 = inlined_call_operand.vmem [shape: bf16[32,32], index: 0, kind: input, shape index: {}]
  %s1 = inlined_call_operand.vmem [shape: bf16[32,128], index: 1, kind: input, shape index: {}]
  %s2 = inlined_call_operand.vmem [shape: bf16[128,128], index: 2, kind: input, shape index: {}]
  %s3 = inlined_call_operand.vmem [shape: f32[1,128], index: 3, kind: input, shape index: {}]
  %s4 = inlined_call_operand.vmem [shape: bf16[32,128], index: 4, kind: output, shape index: {}]
  %s5 = sld [smem:[#allocation0]]
  $region34: #{forward.2} parent=0
    _
  %s7 = ssub.s32 1, %s5
  %s8 = scalar_select 0, %s7, %s5
  // Predicated region
  $region2: #{forward.2} parent=0 // pred_check
    _
  $region3: #{forward.2} parent=0 // pred_check_branch
    %10 = sbr.rel (0) target = $region5
  $region4: #{forward.2} parent=0 // pred_region
    _
  $region5: #{forward.2} parent=0 // pred_fallthru
    _
  // Predicated region
  $region6: #{forward.2} parent=0 // pred_check
    _
  $region7: #{forward.2} parent=0 // pred_check_branch
    %12 = sbr.rel (0) target = $region9
  $region8: #{forward.2} parent=0 // pred_region
    _
  $region9: #{forward.2} parent=0 // pred_fallthru
    _
  // Predicated region
  $region10: #{forward.2} parent=0 // pred_check
    _
  $region11: #{forward.2} parent=0 // pred_check_branch
    %14 = sbr.rel (0) target = $region13
  $region12: #{forward.2} parent=0 // pred_region
    _
  $region13: #{forward.2} parent=0 // pred_fallthru
    _
  // Predicated region
  $region14: #{forward.2} parent=0 // pred_check
    _
  $region15: #{forward.2} parent=0 // pred_check_branch
    %16 = sbr.rel (0) target = $region17
  $region16: #{forward.2} parent=0 // pred_region
    _
  $region17: #{forward.2} parent=0 // pred_fallthru
    _
  %p18 = scmp.eq.s32.totalorder 0, 0
  // Predicated region
  $region18: #{forward.2} parent=0 // pred_check
    %p19 = pneg %p18
  $region19: #{forward.2} parent=0 // pred_check_branch
    %21 = sbr.rel (%p19) target = $region21
  $region20: #{forward.2} parent=0 // pred_region
    %22 = vst [vmem:[#allocation2] sm:$0xff] 0.0
    %23 = vst [vmem:[#allocation2 + $0x8] sm:$0xff] 0.0
    %24 = vst [vmem:[#allocation2 + $0x10] sm:$0xff] 0.0
    %25 = vst [vmem:[#allocation2 + $0x18] sm:$0xff] 0.0
  $region21: #{forward.2} parent=0 // pred_fallthru
    _
  %v26 = vld [vmem:[%s1] sm:$0xf]
  %v27 = vld [vmem:[%s1 + $0x4] sm:$0xf]
  %v28 = vld [vmem:[%s1 + $0x8] sm:$0xf]
  %v29 = vld [vmem:[%s1 + $0xc] sm:$0xf]
  %v30 = vld [vmem:[%s2] sm:$0xf]
  %v31 = vld [vmem:[%s2 + $0x4] sm:$0xf]
  %v32 = vld [vmem:[%s2 + $0x8] sm:$0xf]
  %v33 = vld [vmem:[%s2 + $0xc] sm:$0xf]
  %v34 = vld [vmem:[%s2 + $0x10] sm:$0xf]
  %v35 = vld [vmem:[%s2 + $0x14] sm:$0xf]
  %v36 = vld [vmem:[%s2 + $0x18] sm:$0xf]
  %v37 = vld [vmem:[%s2 + $0x1c] sm:$0xf]
  %v38 = vld [vmem:[%s2 + $0x20] sm:$0xf]
  %v39 = vld [vmem:[%s2 + $0x24] sm:$0xf]
  %v40 = vld [vmem:[%s2 + $0x28] sm:$0xf]
  %v41 = vld [vmem:[%s2 + $0x2c] sm:$0xf]
  %v42 = vld [vmem:[%s2 + $0x30] sm:$0xf]
  %v43 = vld [vmem:[%s2 + $0x34] sm:$0xf]
  %v44 = vld [vmem:[%s2 + $0x38] sm:$0xf]
  %v45 = vld [vmem:[%s2 + $0x3c] sm:$0xf]
  %v46 = vld [vmem:[%s3] sm:$0x1]
  %v48 = vlaneseq
  %v49 = vshrl.u32 %v48, 7
  %v50 = vsub.s32 0, %v49
  %v51 = vrot.slane %v46, %v50
  %v57 = vunpack.c.l.b16 %v26
  %v58 = vunpack.c.l.b16 %v27
  %v59 = vunpack.c.l.b16 %v28
  %v60 = vunpack.c.l.b16 %v29
  %v61 = vpack.c.b16 %v58, %v57
  %v62 = vpack.c.b16 %v60, %v59
  %v81 = vunpack.c.l.b16 %v30
  %v82 = vunpack.c.l.b16 %v31
  %v83 = vunpack.c.l.b16 %v32
  %v84 = vunpack.c.l.b16 %v33
  %v85 = vunpack.c.l.b16 %v34
  %v86 = vunpack.c.l.b16 %v35
  %v87 = vunpack.c.l.b16 %v36
  %v88 = vunpack.c.l.b16 %v37
  %v89 = vunpack.c.l.b16 %v38
  %v90 = vunpack.c.l.b16 %v39
  %v91 = vunpack.c.l.b16 %v40
  %v92 = vunpack.c.l.b16 %v41
  %v93 = vunpack.c.l.b16 %v42
  %v94 = vunpack.c.l.b16 %v43
  %v95 = vunpack.c.l.b16 %v44
  %v96 = vunpack.c.l.b16 %v45
  %v97 = vpack.c.b16 %v82, %v81
  %v98 = vpack.c.b16 %v84, %v83
  %v99 = vpack.c.b16 %v86, %v85
  %v100 = vpack.c.b16 %v88, %v87
  %v101 = vpack.c.b16 %v90, %v89
  %v102 = vpack.c.b16 %v92, %v91
  %v103 = vpack.c.b16 %v94, %v93
  %v104 = vpack.c.b16 %v96, %v95
  %113 = vmatprep.subr.bf16.mxu0 0
  %114 = vmatpush1.bf16.msra.mxu0 %v97
  %115 = vmatprep.subr.bf16.mxu0 0
  %116 = vmatpush1.bf16.msra.mxu0 %v98
  %117 = vmatprep.subr.bf16.mxu0 0
  %118 = vmatpush1.bf16.msra.mxu0 %v99
  %119 = vmatprep.subr.bf16.mxu0 0
  %120 = vmatpush1.bf16.msra.mxu0 %v100
  %121 = vmatprep.subr.bf16.mxu0 0
  %122 = vmatpush1.bf16.msra.mxu0 %v101
  %123 = vmatprep.subr.bf16.mxu0 0
  %124 = vmatpush1.bf16.msra.mxu0 %v102
  %125 = vmatprep.subr.bf16.mxu0 0
  %126 = vmatpush1.bf16.msra.mxu0 %v103
  %127 = vmatprep.subr.bf16.mxu0 0
  %128 = vmatpush1.bf16.msra.mxu0 %v104
  %129 = vmatprep.subr.bf16.mxu0 0
  %130 = vmatpush1.bf16.msra.mxu0 0
  %131 = vmatprep.subr.bf16.mxu0 0
  %132 = vmatpush1.bf16.msra.mxu0 0
  %133 = vmatprep.subr.bf16.mxu0 0
  %134 = vmatpush1.bf16.msra.mxu0 0
  %135 = vmatprep.subr.bf16.mxu0 0
  %136 = vmatpush1.bf16.msra.mxu0 0
  %137 = vmatprep.subr.bf16.mxu0 0
  %138 = vmatpush1.bf16.msra.mxu0 0
  %139 = vmatprep.subr.bf16.mxu0 0
  %140 = vmatpush1.bf16.msra.mxu0 0
  %141 = vmatprep.subr.bf16.mxu0 0
  %142 = vmatpush1.bf16.msra.mxu0 0
  %143 = vmatprep.subr.bf16.mxu0 0
  %144 = vmatpush1.bf16.msra.mxu0 0
  %145 = vmatprep.mubr.bf16.mxu0 0
  %146 = vmatmul.mubr.bf16.gmra.mrb[0].mxu0 %v61
  %v147 = vpop.f32.mrb[0].mxu0
  %v148 = vadd.f32 %v51, %v147
  %v149 = vpop.f32.mrb[0].mxu0
  %v150 = vpop.f32.mrb[0].mxu0
  %v151 = vadd.f32 %v51, %v150
  %v152 = vpop.f32.mrb[0].mxu0
  %153 = vmatprep.mubr.bf16.mxu0 0
  %154 = vmatmul.mubr.bf16.gmra.mrb[0].mxu0 %v62
  %v155 = vpop.f32.mrb[0].mxu0
  %v156 = vadd.f32 %v51, %v155
  %v157 = vpop.f32.mrb[0].mxu0
  %v158 = vpop.f32.mrb[0].mxu0
  %v159 = vadd.f32 %v51, %v158
  %v160 = vpop.f32.mrb[0].mxu0
  %161 = vdwg.mxu0
  %v162 = vld [vmem:[#allocation2] sm:$0xff]
  %v163 = vld [vmem:[#allocation2 + $0x8] sm:$0xff]
  %v164 = vld [vmem:[#allocation2 + $0x10] sm:$0xff]
  %v165 = vld [vmem:[#allocation2 + $0x18] sm:$0xff]
  %v166 = vld [vmem:[%s0] sm:$0xf]
  %v167 = vld [vmem:[%s0 + $0x4] sm:$0xf]
  %v168 = vld [vmem:[%s0 + $0x8] sm:$0xf]
  %v169 = vld [vmem:[%s0 + $0xc] sm:$0xf]
  %v170 = vpack.c.bf16 %v151, %v148
  %v171 = vpack.c.bf16 %v159, %v156
  %v176 = vunpack.c.l.b16 %v166
  %v177 = vunpack.c.l.b16 %v167
  %v178 = vunpack.c.l.b16 %v168
  %v179 = vunpack.c.l.b16 %v169
  %v180 = vpack.c.b16 %v177, %v176
  %v181 = vpack.c.b16 %v179, %v178
  %vm182 = vcmask 261120
  %v184 = vsel %vm182, %v180, 0
  %v187 = vsel %vm182, %v181, 0
  %189 = vmatprep.subr.bf16.mxu0 0
  %190 = vmatpush1.bf16.msra.mxu0 %v170
  %191 = vmatprep.subr.bf16.mxu0 0
  %192 = vmatpush1.bf16.msra.mxu0 %v171
  %193 = vmatprep.subr.bf16.mxu0 0
  %194 = vmatpush1.bf16.msra.mxu0 0
  %195 = vmatprep.subr.bf16.mxu0 0
  %196 = vmatpush1.bf16.msra.mxu0 0
  %197 = vmatprep.subr.bf16.mxu0 0
  %198 = vmatpush1.bf16.msra.mxu0 0
  %199 = vmatprep.subr.bf16.mxu0 0
  %200 = vmatpush1.bf16.msra.mxu0 0
  %201 = vmatprep.subr.bf16.mxu0 0
  %202 = vmatpush1.bf16.msra.mxu0 0
  %203 = vmatprep.subr.bf16.mxu0 0
  %204 = vmatpush1.bf16.msra.mxu0 0
  %205 = vmatprep.subr.bf16.mxu0 0
  %206 = vmatpush1.bf16.msra.mxu0 0
  %207 = vmatprep.subr.bf16.mxu0 0
  %208 = vmatpush1.bf16.msra.mxu0 0
  %209 = vmatprep.subr.bf16.mxu0 0
  %210 = vmatpush1.bf16.msra.mxu0 0
  %211 = vmatprep.subr.bf16.mxu0 0
  %212 = vmatpush1.bf16.msra.mxu0 0
  %213 = vmatprep.subr.bf16.mxu0 0
  %214 = vmatpush1.bf16.msra.mxu0 0
  %215 = vmatprep.subr.bf16.mxu0 0
  %216 = vmatpush1.bf16.msra.mxu0 0
  %217 = vmatprep.subr.bf16.mxu0 0
  %218 = vmatpush1.bf16.msra.mxu0 0
  %219 = vmatprep.subr.bf16.mxu0 0
  %220 = vmatpush1.bf16.msra.mxu0 0
  %221 = vmatprep.mubr.bf16.mxu0 0
  %222 = vmatmul.mubr.bf16.gmra.mrb[0].mxu0 %v184
  %v223 = vpop.f32.mrb[0].mxu0
  %v224 = vadd.f32 0.0, %v223
  %v225 = vpop.f32.mrb[0].mxu0
  %v226 = vpop.f32.mrb[0].mxu0
  %v227 = vadd.f32 0.0, %v226
  %v228 = vpop.f32.mrb[0].mxu0
  %229 = vmatprep.mubr.bf16.mxu0 0
  %230 = vmatmul.mubr.bf16.gmra.mrb[0].mxu0 %v187
  %v231 = vpop.f32.mrb[0].mxu0
  %v232 = vadd.f32 0.0, %v231
  %v233 = vpop.f32.mrb[0].mxu0
  %v234 = vpop.f32.mrb[0].mxu0
  %v235 = vadd.f32 0.0, %v234
  %v236 = vpop.f32.mrb[0].mxu0
  %237 = vdwg.mxu0
  %v238 = vadd.f32 %v162, %v224
  %v239 = vadd.f32 %v163, %v227
  %v240 = vadd.f32 %v164, %v232
  %v241 = vadd.f32 %v165, %v235
  %242 = vst [vmem:[#allocation2] sm:$0xff] %v238
  %243 = vst [vmem:[#allocation2 + $0x8] sm:$0xff] %v239
  %244 = vst [vmem:[#allocation2 + $0x10] sm:$0xff] %v240
  %245 = vst [vmem:[#allocation2 + $0x18] sm:$0xff] %v241
  // Predicated region
  $region22: #{forward.2} parent=0 // pred_check
    %p246 = pneg %p18
  $region23: #{forward.2} parent=0 // pred_check_branch
    %248 = sbr.rel (%p246) target = $region25
  $region24: #{forward.2} parent=0 // pred_region
    %v249 = vld [vmem:[#allocation2] sm:$0xff]
    %v250 = vld [vmem:[#allocation2 + $0x8] sm:$0xff]
    %v251 = vld [vmem:[#allocation2 + $0x10] sm:$0xff]
    %v252 = vld [vmem:[#allocation2 + $0x18] sm:$0xff]
    %vm253 = vcmp.ge.f32.partialorder %v249, 0.0
    %vm254 = vcmp.ge.f32.partialorder %v250, 0.0
    %vm255 = vcmp.ge.f32.partialorder %v251, 0.0
    %vm256 = vcmp.ge.f32.partialorder %v252, 0.0
    %v257 = vmul.f32 %v249, 0.2
    %v258 = vmul.f32 %v250, 0.2
    %v259 = vmul.f32 %v251, 0.2
    %v260 = vmul.f32 %v252, 0.2
    %v261 = vsel %vm253, %v249, %v257
    %v262 = vsel %vm254, %v250, %v258
    %v263 = vsel %vm255, %v251, %v259
    %v264 = vsel %vm256, %v252, %v260
    %v265 = vpack.c.bf16 %v262, %v261
    %v266 = vpack.c.bf16 %v264, %v263
    %v269 = vunpack.c.l.b16 %v265
    %v270 = vunpack.c.h.b16 %v265
    %v271 = vunpack.c.l.b16 %v266
    %v272 = vunpack.c.h.b16 %v266
    %v273 = vpack.c.b16 %v269, %v269
    %v274 = vpack.c.b16 %v270, %v270
    %v275 = vpack.c.b16 %v271, %v271
    %v276 = vpack.c.b16 %v272, %v272
    %281 = vst [vmem:[%s4] sm:$0xf] %v273
    %282 = vst [vmem:[%s4 + $0x4] sm:$0xf] %v274
    %283 = vst [vmem:[%s4 + $0x8] sm:$0xf] %v275
    %284 = vst [vmem:[%s4 + $0xc] sm:$0xf] %v276
  $region25: #{forward.2} parent=0 // pred_fallthru
    _
  // Predicated region
  $region26: #{forward.2} parent=0 // pred_check
    _
  $region27: #{forward.2} parent=0 // pred_check_branch
    %286 = sbr.rel (0) target = $region29
  $region28: #{forward.2} parent=0 // pred_region
    _
  $region29: #{forward.2} parent=0 // pred_fallthru
    _
  // Predicated region
  $region30: #{forward.2} parent=0 // pred_check
    _
  $region31: #{forward.2} parent=0 // pred_check_branch
    %288 = sbr.rel (0) target = $region33
  $region32: #{forward.2} parent=0 // pred_region
    _
  $region33: #{forward.2} parent=0 // pred_fallthru
    _

</llo_original>
